<compile_context>
chip_gen: v5e
topology: v5e:2x2
jax: 0.10.0
libtpu: 0.0.40
codegen_flags: <defaults>
</compile_context>

<pallas_src>
import jax
import jax.numpy as jnp
from jax.experimental import pallas as pl
from jax.experimental.pallas import tpu as pltpu

_MB = 1024 * 1024


def _round_up(x, m):
    return (x + m - 1) // m * m


def _chip_config():
    """Generation-aware tile targets + scoped-VMEM cap."""
    kind = ""
    try:
        kind = jax.devices()[0].device_kind.lower()
    except Exception:
        pass
    vmem_cap = None
    try:
        vmem_cap = getattr(pltpu.get_tpu_info(), "vmem_capacity_bytes", None)
    except Exception:
        pass

    if ("v7" in kind) or (vmem_cap is not None and vmem_cap <= 64 * _MB):
        # v7x: ~3.2 TB/s HBM (~310 flop/byte roofline), 64 MiB VMEM, 2 TCs.
        cfg = dict(tm=512, tn=1024, tk=1024, vmem=52 * _MB, cores=2)
    elif "v6" in kind:
        # v6e: ~918 TF/s bf16 / ~1.4 TB/s HBM (~650 flop/byte), 128 MiB VMEM.
        cfg = dict(tm=1024, tn=2048, tk=2048, vmem=100 * _MB, cores=1)
    elif ("v5e" in kind) or ("v5 lite" in kind) or ("v5lite" in kind):
        # v5e: ~197 TF/s bf16 / ~0.82 TB/s HBM (~240 flop/byte).
        cfg = dict(tm=512, tn=512, tk=1024, vmem=96 * _MB, cores=1)
    else:
        # Unknown chip: moderate tiles that also fit a 64 MiB VMEM budget.
        cfg = dict(tm=512, tn=1024, tk=1024, vmem=48 * _MB, cores=1)

    if vmem_cap is not None:
        cfg["vmem"] = min(cfg["vmem"], int(vmem_cap * 0.8))
    return cfg


def _pick_tile(target, dp):
    """Largest lane-aligned tile <= target that divides dp (128 always does)."""
    for t in (target, 2048, 1024, 512, 256, 128):
        if t <= target and t <= dp and dp % t == 0:
            return t
    return 128


def residual_linear_kernel(x_ref, wt_ref, xres_ref, b_ref, o_ref, acc_ref):
    """One (i, j, k) grid step of  out[i,j] = sum_k x[i,k] . Wt[k,j] + b[j] + x[i,j]."""
    k = pl.program_id(2)

    @pl.when(k == 0)
    def _init():
        acc_ref[...] = jnp.zeros_like(acc_ref)

    # W was pre-transposed once in the wrapper to [in, out] (and cast to the
    # compute dtype); plain ((1,),(0,)) contraction -> no per-tile XLU
    # transpose of W.  The x tile is cast to the compute dtype here (VPU),
    # so the f32 HBM x buffer can be shared with the residual stream.
    acc_ref[...] += jnp.dot(
        x_ref[...].astype(wt_ref.dtype), wt_ref[...],
        preferred_element_type=jnp.float32,
    )

    @pl.when(k == pl.num_programs(2) - 1)
    def _finalize():
        y = acc_ref[...] + b_ref[...].astype(jnp.float32)     # bias (row broadcast)
        y = y + xres_ref[...].astype(jnp.float32)             # residual add in f32
        o_ref[...] = y.astype(o_ref.dtype)


def residual_linear(x, w, b, *, compute_dtype=jnp.bfloat16, tm=None, tn=None, tk=None):
    """out = Linear(x; w, b) + x.

    x: [M, D], w: [D, D] (PyTorch nn.Linear layout [out, in]), b: [D].
    compute_dtype: dtype of the matmul operands (default bf16 = MXU fast path);
    accumulation, bias and residual stay f32, output keeps x.dtype.
    """
    M, D = x.shape
    assert w.shape == (D, D) and b.shape == (D,)

    cfg = _chip_config()
    tm = tm if tm is not None else cfg["tm"]
    tn = tn if tn is not None else cfg["tn"]
    tk = tk if tk is not None else cfg["tk"]

    # --- tile selection (lane-dense, (8,128)-aligned) -----------------------
    Dp = _round_up(D, 128)
    tn = _pick_tile(tn, Dp)
    tk = _pick_tile(tk, Dp)
    tm = min(tm, _round_up(M, 8))

    # 2-TensorCore chips (v7x): don't let the (i, j) grid collapse to one block.
    if cfg["cores"] >= 2 and Dp // tn == 1 and tm >= _round_up(M, 8) and M >= 16:
        tm = _round_up(-(-M // 2), 8)

    Mp = _round_up(M, tm)
    need_pad = (Mp != M) or (Dp != D)

    # --- operand prep (no HBM copies on production shapes) ------------------
    x_p = x
    if need_pad:
        # Single padded copy of x, reused for BOTH the matmul and residual streams.
        x_p = jnp.pad(x, ((0, Mp - M), (0, Dp - D)))

    # Pre-transpose + cast W once ([out, in] -> [in, out]); weights are static
    # across calls in a real model, so this is amortized.
    w_t = jnp.transpose(w).astype(compute_dtype)
    b2 = b.reshape(1, D)
    if Dp != D:
        w_t = jnp.pad(w_t, ((0, Dp - D), (0, Dp - D)))
        b2 = jnp.pad(b2, ((0, 0), (0, Dp - D)))

    grid = (Mp // tm, Dp // tn, Dp // tk)
    gi, gj, gk = grid

    # Grid-level HBM traffic: x (matmul stream) is re-read per j block, W per i block.
    bytes_accessed = (
        Mp * Dp * x_p.dtype.itemsize * gj        # x, matmul stream
        + Dp * Dp * w_t.dtype.itemsize * gi      # W^T
        + Mp * Dp * x_p.dtype.itemsize           # x, residual stream (k-invariant)
        + Dp * b2.dtype.itemsize * gi            # bias
        + Mp * Dp * x.dtype.itemsize             # output
    )
    cost = pl.CostEstimate(
        flops=2 * Mp * Dp * Dp,
        transcendentals=0,
        bytes_accessed=bytes_accessed,
    )

    out = pl.pallas_call(
        residual_linear_kernel,
        out_shape=jax.ShapeDtypeStruct((Mp, Dp), x.dtype),
        grid_spec=pltpu.PrefetchScalarGridSpec(
            num_scalar_prefetch=0,
            grid=grid,
            in_specs=[
                pl.BlockSpec((tm, tk), lambda i, j, k: (i, k)),   # x  (matmul stream)
                pl.BlockSpec((tk, tn), lambda i, j, k: (k, j)),   # W^T [in, out]
                pl.BlockSpec((tm, tn), lambda i, j, k: (i, j)),   # x  (residual stream)
                pl.BlockSpec((1, tn), lambda i, j, k: (0, j)),    # bias
            ],
            out_specs=pl.BlockSpec((tm, tn), lambda i, j, k: (i, j)),
            scratch_shapes=[pltpu.VMEM((tm, tn), jnp.float32)],
        ),
        compiler_params=pltpu.CompilerParams(
            dimension_semantics=("parallel", "parallel", "arbitrary"),
            vmem_limit_bytes=cfg["vmem"],
        ),
        cost_estimate=cost,
        # NOTE: input_output_aliases intentionally NOT used: the (i, j) output
        # writeback would clobber x columns still needed as matmul input for
        # later j tiles of the same row block.
    )(x_p, w_t, x_p, b2)   # same x buffer feeds both the matmul and residual streams

    if need_pad:
        out = out[:M, :D]
    return out


if __name__ == "__main__":
    # Small shapes consistent with a transformer block: batch=2, seq=8, hidden=32.
    batch, seq, hidden = 2, 8, 32
    key = jax.random.PRNGKey(0)
    kx, kw, kb = jax.random.split(key, 3)

    x = jax.random.normal(kx, (batch, seq, hidden), dtype=jnp.float32)
    # Deterministic parameters for fn = Linear(hidden, hidden), PyTorch [out, in] layout.
    w = jax.random.normal(kw, (hidden, hidden), dtype=jnp.float32) * 0.02
    b = jax.random.normal(kb, (hidden,), dtype=jnp.float32) * 0.01

    # Flatten tokens onto the row axis for the kernel, restore after.
    x2 = x.reshape(batch * seq, hidden)

    # Reference (plain JAX): fn(x) + x  with nn.Linear semantics x @ W.T + b.
    ref = (jnp.einsum("bsh,oh->bso", x, w) + b) + x

    # Exact-precision path (f32 matmul operands, explicit opt-in).
    out_f32 = residual_linear(x2, w, b, compute_dtype=jnp.float32)
    out_f32 = jax.block_until_ready(out_f32).reshape(batch, seq, hidden)
    assert jnp.allclose(out_f32, ref, atol=1e-5, rtol=1e-5), "f32 mismatch vs reference"

    # Default fast path: bf16 matmul operands, f32 accumulate + bias + residual.
    out_bf16 = residual_linear(x2, w, b)
    out_bf16 = jax.block_until_ready(out_bf16).reshape(batch, seq, hidden)
    assert jnp.allclose(out_bf16, ref, atol=2e-2, rtol=2e-2), "bf16 mismatch vs reference"

    print("KERNEL_OK")
</pallas_src>

<mosaic_0001>
module attributes {stable_mosaic.version = 11 : i64} {
  func.func @residual_linear_kernel(%arg0: i32, %arg1: i32, %arg2: i32, %arg3: memref<16x128xf32, #tpu.memory_space<vmem>>, %arg4: memref<128x128xf32, #tpu.memory_space<vmem>>, %arg5: memref<16x128xf32, #tpu.memory_space<vmem>>, %arg6: memref<1x128xf32, #tpu.memory_space<vmem>>, %arg7: memref<16x128xf32, #tpu.memory_space<vmem>>, %arg8: memref<16x128xf32, #tpu.memory_space<vmem>>) attributes {dimension_semantics = [#tpu.dimension_semantics<parallel>, #tpu.dimension_semantics<parallel>, #tpu.dimension_semantics<arbitrary>], iteration_bounds = array<i64: 1, 1, 1>, scalar_prefetch = 0 : i64, scratch_operands = 1 : i64, tpu.core_type = #tpu.core_type<tc>, window_params = [{transform_indices = @transform_0, window_bounds = array<i64: 16, 128>}, {transform_indices = @transform_1, window_bounds = array<i64: 128, 128>}, {transform_indices = @transform_2, window_bounds = array<i64: 16, 128>}, {transform_indices = @transform_3, window_bounds = array<i64: 1, 128>}, {transform_indices = @transform_4, window_bounds = array<i64: 16, 128>}]} {
    %c0_i32 = arith.constant 0 : i32
    %0 = arith.cmpi eq, %arg2, %c0_i32 : i32
    %1 = arith.extui %0 : i1 to i32
    %c0_i32_0 = arith.constant 0 : i32
    %2 = arith.cmpi ne, %1, %c0_i32_0 : i32
    scf.if %2 {
      %cst_10 = arith.constant 0.000000e+00 : f32
      %12 = vector.broadcast %cst_10 : f32 to vector<16x128xf32>
      %c0_11 = arith.constant 0 : index
      %c0_12 = arith.constant 0 : index
      %13 = vector.load %arg8[%c0_11, %c0_12] : memref<16x128xf32, #tpu.memory_space<vmem>>, vector<16x128xf32>
      tpu.vector_store %arg8[%c0_11, %c0_12], %12 {strides = array<i32>} : memref<16x128xf32, #tpu.memory_space<vmem>>, vector<16x128xf32>,
    } else {
    }
    %c0 = arith.constant 0 : index
    %c0_1 = arith.constant 0 : index
    %3 = vector.load %arg8[%c0, %c0_1] : memref<16x128xf32, #tpu.memory_space<vmem>>, vector<16x128xf32>
    %c0_2 = arith.constant 0 : index
    %c0_3 = arith.constant 0 : index
    %4 = vector.load %arg3[%c0_2, %c0_3] : memref<16x128xf32, #tpu.memory_space<vmem>>, vector<16x128xf32>
    %c0_4 = arith.constant 0 : index
    %c0_5 = arith.constant 0 : index
    %5 = vector.load %arg4[%c0_4, %c0_5] : memref<128x128xf32, #tpu.memory_space<vmem>>, vector<128x128xf32>
    %cst = arith.constant dense<0.000000e+00> : vector<16x128xf32>
    %6 = tpu.matmul %4, %5, %cst {dimension_numbers = #tpu.dot_dimension_numbers<[1], [0], [0], [1], [0, 0, 1, 1], [], []>} : vector<16x128xf32>, vector<128x128xf32>, vector<16x128xf32> -> vector<16x128xf32>
    %7 = arith.addf %3, %6 : vector<16x128xf32>
    %c0_6 = arith.constant 0 : index
    %c0_7 = arith.constant 0 : index
    %8 = vector.load %arg8[%c0_6, %c0_7] : memref<16x128xf32, #tpu.memory_space<vmem>>, vector<16x128xf32>
    tpu.vector_store %arg8[%c0_6, %c0_7], %7 {strides = array<i32>} : memref<16x128xf32, #tpu.memory_space<vmem>>, vector<16x128xf32>,
    %c0_i32_8 = arith.constant 0 : i32
    %9 = arith.cmpi eq, %arg2, %c0_i32_8 : i32
    %10 = arith.extui %9 : i1 to i32
    %c0_i32_9 = arith.constant 0 : i32
    %11 = arith.cmpi ne, %10, %c0_i32_9 : i32
    scf.if %11 {
      %c0_10 = arith.constant 0 : index
      %c0_11 = arith.constant 0 : index
      %12 = vector.load %arg8[%c0_10, %c0_11] : memref<16x128xf32, #tpu.memory_space<vmem>>, vector<16x128xf32>
      %c0_12 = arith.constant 0 : index
      %c0_13 = arith.constant 0 : index
      %13 = vector.load %arg6[%c0_12, %c0_13] : memref<1x128xf32, #tpu.memory_space<vmem>>, vector<1x128xf32>
      %14 = vector.broadcast %13 : vector<1x128xf32> to vector<16x128xf32>
      %15 = arith.addf %12, %14 : vector<16x128xf32>
      %c0_14 = arith.constant 0 : index
      %c0_15 = arith.constant 0 : index
      %16 = vector.load %arg5[%c0_14, %c0_15] : memref<16x128xf32, #tpu.memory_space<vmem>>, vector<16x128xf32>
      %17 = arith.addf %15, %16 : vector<16x128xf32>
      %c0_16 = arith.constant 0 : index
      %c0_17 = arith.constant 0 : index
      %18 = vector.load %arg7[%c0_16, %c0_17] : memref<16x128xf32, #tpu.memory_space<vmem>>, vector<16x128xf32>
      tpu.vector_store %arg7[%c0_16, %c0_17], %17 {strides = array<i32>} : memref<16x128xf32, #tpu.memory_space<vmem>>, vector<16x128xf32>,
    } else {
    }
    return
  }
  func.func @transform_0(%arg0: i32, %arg1: i32, %arg2: i32) -> (i32, i32) {
    %c0_i32 = arith.constant 0 : i32
    return %arg0, %arg2 : i32, i32
  }
  func.func @transform_1(%arg0: i32, %arg1: i32, %arg2: i32) -> (i32, i32) {
    %c0_i32 = arith.constant 0 : i32
    return %arg2, %arg1 : i32, i32
  }
  func.func @transform_2(%arg0: i32, %arg1: i32, %arg2: i32) -> (i32, i32) {
    %c0_i32 = arith.constant 0 : i32
    return %arg0, %arg1 : i32, i32
  }
  func.func @transform_3(%arg0: i32, %arg1: i32, %arg2: i32) -> (i32, i32) {
    %c0_i32 = arith.constant 0 : i32
    %c0_i32_0 = arith.constant 0 : i32
    return %c0_i32, %arg1 : i32, i32
  }
  func.func @transform_4(%arg0: i32, %arg1: i32, %arg2: i32) -> (i32, i32) {
    %c0_i32 = arith.constant 0 : i32
    return %arg0, %arg1 : i32, i32
  }
}

</mosaic_0001>

<llo_original>
// kernel: tpu_custom_call.1
$region0: #{tpu_custom_call.1}
  #allocation0 [shape = 'u32[]', space=smem, size = 0x4, offset = 0x4, fixed_abs, tag = 'smem constant byte address 0x4 - core index']
  #allocation1 [shape = 'u32[72,128]{1,0:T(1,128)}', space=vmem, size = 0x9000, scoped, tag = 'internal scratch']
  #allocation2 [shape = 'f32[16,128]{1,0:T(8,128)}', space=vmem, size = 0x2000, scoped, tag = 'scratch operand']
  %s0 = inlined_call_operand.hbm [shape: f32[16,128], index: 0, kind: input, shape index: {}]
  %s1 = inlined_call_operand.hbm [shape: f32[128,128], index: 1, kind: input, shape index: {}]
  %s2 = inlined_call_operand.hbm [shape: f32[16,128], index: 2, kind: input, shape index: {}]
  %s3 = inlined_call_operand.vmem [shape: f32[1,128], index: 3, kind: input, shape index: {}]
  %s4 = inlined_call_operand.hbm [shape: f32[16,128], index: 4, kind: output, shape index: {}]
  %s5 = sld [smem:[#allocation0]]
  $region46: #{tpu_custom_call.1} parent=0
    _
  %s7 = ssub.s32 1, %s5
  %s8 = scalar_select 0, %s7, %s5
  $region1: #{tpu_custom_call.1} parent=0
    #allocation3 [shape = 'u8[8192]{0}', space=vmem, size = 0x2000, scoped, tag = 'input window, operand 0, single buffered']
    #allocation4 [shape = 's32[1]{0}', space=sflag, size = 0x4, scoped, tag = 'scoped memory for tpu_custom_call.1']
    #allocation5 [shape = 's32[1]{0}', space=sflag, size = 0x4, scoped, tag = 'scoped memory for tpu_custom_call.1']
    #allocation6 [shape = 'u8[65536]{0}', space=vmem, size = 0x10000, scoped, tag = 'input window, operand 1, single buffered']
    #allocation7 [shape = 's32[1]{0}', space=sflag, size = 0x4, scoped, tag = 'scoped memory for tpu_custom_call.1']
    #allocation8 [shape = 'u8[8192]{0}', space=vmem, size = 0x2000, scoped, tag = 'input window, operand 2, single buffered']
    #allocation9 [shape = 'u8[8192]{0}', space=vmem, size = 0x2000, scoped, tag = 'output window, operand 0, single buffered']
    %9 = vsyncpa [#allocation4], 0
    %10 = vsyncpa [#allocation7], 0
    %11 = vsyncpa [#allocation5], 0
    // Predicated region
    $region2: #{tpu_custom_call.1} parent=1 // pred_check
      _
    $region3: #{tpu_custom_call.1} parent=1 // pred_check_branch
      %13 = sbr.rel (0) target = $region5
    $region4: #{tpu_custom_call.1} parent=1 // pred_region
      %15 = vsyncadd [#allocation4], 0
      %s16 = sshll.u32 %s0, 4
      %s17 = int_to_ptr.hbm [resolvable:$true] %s16
      %s18 = sshll.u32 [#allocation3], 4
      %s19 = int_to_ptr.vmem [resolvable:$true] %s18
      %24 = dma.hbm_to_vmem [thread:$0]  %s17, 256, %s19, [#allocation4], 128, 128, 8
    $region5: #{tpu_custom_call.1} parent=1 // pred_fallthru
      _
    // Predicated region
    $region6: #{tpu_custom_call.1} parent=1 // pred_check
      _
    $region7: #{tpu_custom_call.1} parent=1 // pred_check_branch
      %26 = sbr.rel (0) target = $region9
    $region8: #{tpu_custom_call.1} parent=1 // pred_region
      %28 = vsyncadd [#allocation7], 0
      %s29 = sshll.u32 %s1, 4
      %s30 = int_to_ptr.hbm [resolvable:$true] %s29
      %s31 = sshll.u32 [#allocation6], 4
      %s32 = int_to_ptr.vmem [resolvable:$true] %s31
      %37 = dma.hbm_to_vmem [thread:$0]  %s30, 2048, %s32, [#allocation7], 128, 128, 8
    $region9: #{tpu_custom_call.1} parent=1 // pred_fallthru
      _
    // Predicated region
    $region10: #{tpu_custom_call.1} parent=1 // pred_check
      _
    $region11: #{tpu_custom_call.1} parent=1 // pred_check_branch
      %39 = sbr.rel (0) target = $region13
    $region12: #{tpu_custom_call.1} parent=1 // pred_region
      %41 = vsyncadd [#allocation7], 0
      %s42 = sshll.u32 %s2, 4
      %s43 = int_to_ptr.hbm [resolvable:$true] %s42
      %s44 = sshll.u32 [#allocation8], 4
      %s45 = int_to_ptr.vmem [resolvable:$true] %s44
      %50 = dma.hbm_to_vmem [thread:$0]  %s43, 256, %s45, [#allocation7], 128, 128, 8
    $region13: #{tpu_custom_call.1} parent=1 // pred_fallthru
      _
    // Predicated region
    $region14: #{tpu_custom_call.1} parent=1 // pred_check
      _
    $region15: #{tpu_custom_call.1} parent=1 // pred_check_branch
      %52 = sbr.rel (0) target = $region17
    $region16: #{tpu_custom_call.1} parent=1 // pred_region
      _
    $region17: #{tpu_custom_call.1} parent=1 // pred_fallthru
      _
    // Predicated region
    $region18: #{tpu_custom_call.1} parent=1 // pred_check
      _
    $region19: #{tpu_custom_call.1} parent=1 // pred_check_branch
      %54 = sbr.rel (0) target = $region21
    $region20: #{tpu_custom_call.1} parent=1 // pred_region
      %56 = dma.done [#allocation4], 256
    $region21: #{tpu_custom_call.1} parent=1 // pred_fallthru
      _
    // Predicated region
    $region22: #{tpu_custom_call.1} parent=1 // pred_check
      _
    $region23: #{tpu_custom_call.1} parent=1 // pred_check_branch
      %58 = sbr.rel (0) target = $region25
    $region24: #{tpu_custom_call.1} parent=1 // pred_region
      %60 = dma.done [#allocation7], 2048
    $region25: #{tpu_custom_call.1} parent=1 // pred_fallthru
      _
    // Predicated region
    $region26: #{tpu_custom_call.1} parent=1 // pred_check
      _
    $region27: #{tpu_custom_call.1} parent=1 // pred_check_branch
      %62 = sbr.rel (0) target = $region29
    $region28: #{tpu_custom_call.1} parent=1 // pred_region
      %64 = dma.done [#allocation7], 256
    $region29: #{tpu_custom_call.1} parent=1 // pred_fallthru
      _
    %p65 = scmp.eq.s32.totalorder 0, 0
    // Predicated region
    $region30: #{tpu_custom_call.1} parent=1 // pred_check
      %p66 = pneg %p65
    $region31: #{tpu_custom_call.1} parent=1 // pred_check_branch
      %68 = sbr.rel (%p66) target = $region33
    $region32: #{tpu_custom_call.1} parent=1 // pred_region
      %69 = vst [vmem:[#allocation2] sm:$0xff] 0.0
      %70 = vst [vmem:[#allocation2 + $0x8] sm:$0xff] 0.0
    $region33: #{tpu_custom_call.1} parent=1 // pred_fallthru
      _
    %v71 = vld [vmem:[#allocation2] sm:$0xff]
    %v72 = vld [vmem:[#allocation2 + $0x8] sm:$0xff]
    %v73 = vld [vmem:[#allocation3] sm:$0xff]
    %v74 = vld [vmem:[#allocation3 + $0x8] sm:$0xff]
    %v75 = vld [vmem:[#allocation6] sm:$0xff]
    %v76 = vld [vmem:[#allocation6 + $0x8] sm:$0xff]
    %v77 = vld [vmem:[#allocation6 + $0x10] sm:$0xff]
    %v78 = vld [vmem:[#allocation6 + $0x18] sm:$0xff]
    %v79 = vld [vmem:[#allocation6 + $0x20] sm:$0xff]
    %v80 = vld [vmem:[#allocation6 + $0x28] sm:$0xff]
    %v81 = vld [vmem:[#allocation6 + $0x30] sm:$0xff]
    %v82 = vld [vmem:[#allocation6 + $0x38] sm:$0xff]
    %v83 = vld [vmem:[#allocation6 + $0x40] sm:$0xff]
    %v84 = vld [vmem:[#allocation6 + $0x48] sm:$0xff]
    %v85 = vld [vmem:[#allocation6 + $0x50] sm:$0xff]
    %v86 = vld [vmem:[#allocation6 + $0x58] sm:$0xff]
    %v87 = vld [vmem:[#allocation6 + $0x60] sm:$0xff]
    %v88 = vld [vmem:[#allocation6 + $0x68] sm:$0xff]
    %v89 = vld [vmem:[#allocation6 + $0x70] sm:$0xff]
    %v90 = vld [vmem:[#allocation6 + $0x78] sm:$0xff]
    %91 = vmatpush.msra.mxu0 %v90
    %92 = vmatpush.msra.mxu0 %v89
    %93 = vmatpush.msra.mxu0 %v88
    %94 = vmatpush.msra.mxu0 %v87
    %95 = vmatpush.msra.mxu0 %v86
    %96 = vmatpush.msra.mxu0 %v85
    %97 = vmatpush.msra.mxu0 %v84
    %98 = vmatpush.msra.mxu0 %v83
    %99 = vmatpush.msra.mxu0 %v82
    %100 = vmatpush.msra.mxu0 %v81
    %101 = vmatpush.msra.mxu0 %v80
    %102 = vmatpush.msra.mxu0 %v79
    %103 = vmatpush.msra.mxu0 %v78
    %104 = vmatpush.msra.mxu0 %v77
    %105 = vmatpush.msra.mxu0 %v76
    %106 = vmatpush.msra.mxu0 %v75
    %107 = vmatmul.f32.gmra.mxu0 %v73
    %v108 = vpop.f32.mrf.mxu0
    %v109 = vadd.f32 0.0, %v108
    %110 = vmatmul.f32.gmra.mxu0 %v74
    %v111 = vpop.f32.mrf.mxu0
    %v112 = vadd.f32 0.0, %v111
    %113 = vdwg.mxu0
    %v114 = vadd.f32 %v71, %v109
    %v115 = vadd.f32 %v72, %v112
    %116 = vst [vmem:[#allocation2] sm:$0xff] %v114
    %117 = vst [vmem:[#allocation2 + $0x8] sm:$0xff] %v115
    // Predicated region
    $region34: #{tpu_custom_call.1} parent=1 // pred_check
      %p118 = pneg %p65
    $region35: #{tpu_custom_call.1} parent=1 // pred_check_branch
      %120 = sbr.rel (%p118) target = $region37
    $region36: #{tpu_custom_call.1} parent=1 // pred_region
      %v121 = vld [vmem:[#allocation2] sm:$0xff]
      %v122 = vld [vmem:[#allocation2 + $0x8] sm:$0xff]
      %v123 = vld [vmem:[%s3] sm:$0x1]
      %v125 = vperm.slane %v123, 0
      %v127 = vadd.f32 %v121, %v125
      %v128 = vadd.f32 %v122, %v125
      %v129 = vld [vmem:[#allocation8] sm:$0xff]
      %v130 = vld [vmem:[#allocation8 + $0x8] sm:$0xff]
      %v131 = vadd.f32 %v127, %v129
      %v132 = vadd.f32 %v128, %v130
      %133 = vst [vmem:[#allocation9] sm:$0xff] %v131
      %134 = vst [vmem:[#allocation9 + $0x8] sm:$0xff] %v132
    $region37: #{tpu_custom_call.1} parent=1 // pred_fallthru
      _
    // Predicated region
    $region38: #{tpu_custom_call.1} parent=1 // pred_check
      _
    $region39: #{tpu_custom_call.1} parent=1 // pred_check_branch
      %136 = sbr.rel (0) target = $region41
    $region40: #{tpu_custom_call.1} parent=1 // pred_region
      %138 = vsyncadd [#allocation5], 0
      %s139 = sshll.u32 [#allocation9], 4
      %s140 = int_to_ptr.vmem [resolvable:$true] %s139
      %s141 = sshll.u32 %s4, 4
      %s142 = int_to_ptr.hbm [resolvable:$true] %s141
      %147 = dma.vmem_to_hbm [thread:$0]  %s140, 256, %s142, [#allocation5], 128, 128, 8
    $region41: #{tpu_custom_call.1} parent=1 // pred_fallthru
      _
    // Predicated region
    $region42: #{tpu_custom_call.1} parent=1 // pred_check
      _
    $region43: #{tpu_custom_call.1} parent=1 // pred_check_branch
      %149 = sbr.rel (0) target = $region45
    $region44: #{tpu_custom_call.1} parent=1 // pred_region
      %151 = dma.done [#allocation5], 256
    $region45: #{tpu_custom_call.1} parent=1 // pred_fallthru
      _
    %152 = vsyncpa [#allocation4], 1
    %153 = vsyncpa [#allocation7], 1
    %154 = vsyncpa [#allocation5], 1

</llo_original>
